<compile_context>
chip_gen: v5e
topology: v5e:2x2
jax: 0.10.0
libtpu: 0.0.40
codegen_flags: <defaults>
</compile_context>

<pallas_src>
import math
import functools

import jax
import jax.numpy as jnp
from jax.experimental import pallas as pl
from jax.experimental.pallas import tpu as pltpu


def _pick_q_tile(T, max_tile=256):
    """Largest q-tile <= max_tile that divides T (bounds the score tensor)."""
    if T <= max_tile:
        return T
    for qt in range(max_tile, 0, -1):
        if T % qt == 0:
            return qt
    return T


def _pick_batch_fold(B, T, target_rows=256):
    """Batch elements folded per grid step: fill the matmul M dim for small T,
    but keep >= 2 grid steps when B allows it (feeds both v7x TensorCores)."""
    bt = max(1, min(B, target_rows // max(T, 1)))
    while B % bt:
        bt -= 1
    if B // bt < 2 and B >= 2:
        bt = B // 2
        while B % bt:
            bt -= 1
    return bt


def _vmem_limit_bytes():
    """~3/4 of physical VMEM (≈48 MiB on v7x, 96 MiB on v5e/v6e), capped."""
    try:
        cap = pltpu.get_tpu_info().vmem_capacity_bytes
    except Exception:
        cap = 128 * 1024 * 1024
    return int(min(cap * 3 // 4, 96 * 1024 * 1024))


def _mha_kernel(x_ref, wqkv_ref, bqkv_ref, wp_ref, bp_ref, o_ref, *,
                n_head, is_masked, q_tile):
    """Fused QKV projection + batched-head attention + output projection.

    Grid is (B // bt,); each grid step handles `bt` batch elements.
      x_ref:    (bt, T, C)  f32 (cast to bf16 in VMEM)
      wqkv_ref: (C, 3C)     bf16, fused [Wq*scale | Wk | Wv]
      bqkv_ref: (1, 3C)     f32,  fused [bq*scale | bk | bv]
      wp_ref:   (C, C)      bf16 output-projection weight
      bp_ref:   (1, C)      f32
      o_ref:    (bt, T, C)  output tile (x dtype)
    """
    bt, T, C = x_ref.shape
    hs = C // n_head
    bh = bt * n_head

    x = x_ref[...].astype(jnp.bfloat16).reshape(bt * T, C)

    # Fused QKV projection: one wide MXU matmul, f32 accumulation.
    # The 1/sqrt(hs) scale is already baked into the Q columns of wqkv/bqkv.
    qkv = jnp.dot(x, wqkv_ref[...],
                  preferred_element_type=jnp.float32) + bqkv_ref[0]   # (bt*T, 3C)

    def to_heads(m):                  # (bt*T, C) f32 -> (bt*n_head, T, hs) bf16
        return (m.astype(jnp.bfloat16)
                 .reshape(bt, T, n_head, hs)
                 .transpose(0, 2, 1, 3)
                 .reshape(bh, T, hs))

    q = to_heads(qkv[:, :C])
    k = to_heads(qkv[:, C:2 * C])
    v = to_heads(qkv[:, 2 * C:])

    # q-tiled attention: score tensor is (bh, tq, T), never (bh, T, T).
    num_qt = T // q_tile
    for qi in range(num_qt):
        q_blk = q[:, qi * q_tile:(qi + 1) * q_tile, :]              # (bh, tq, hs)

        # Batched scores over all heads; contraction on hs (no explicit k.T).
        att = jnp.einsum("bqd,bkd->bqk", q_blk, k,
                         preferred_element_type=jnp.float32)        # (bh, tq, T)

        if is_masked:
            # 2-D causal mask, broadcast over the (bt*n_head) leading dim.
            row = qi * q_tile + jax.lax.broadcasted_iota(
                jnp.int32, (q_tile, T), 0)
            col = jax.lax.broadcasted_iota(jnp.int32, (q_tile, T), 1)
            att = jnp.where((col <= row)[None], att, -1e30)         # finite mask

        # Softmax along the key axis (attn_drop: identity, eval mode).
        att = att - jnp.max(att, axis=-1, keepdims=True)
        p = jnp.exp(att)
        p = p * pl.reciprocal(jnp.sum(p, axis=-1, keepdims=True), approx=True)

        y = jnp.einsum("bqk,bkd->bqd", p.astype(jnp.bfloat16), v,
                       preferred_element_type=jnp.float32)          # (bh, tq, hs)

        # (bt, h, tq, hs) -> (bt*tq, C)  == transpose(1, 2).view(B, T, C).
        y = (y.astype(jnp.bfloat16)
              .reshape(bt, n_head, q_tile, hs)
              .transpose(0, 2, 1, 3)
              .reshape(bt * q_tile, C))

        # Output projection (resid_drop: identity, eval mode).
        out = jnp.dot(y, wp_ref[...],
                      preferred_element_type=jnp.float32) + bp_ref[0]
        o_ref[:, qi * q_tile:(qi + 1) * q_tile, :] = (
            out.reshape(bt, q_tile, C).astype(o_ref.dtype))


def prepare_mha_params(params, *, n_head):
    """Fuse / cast weights ONCE (call at weight-load time, not per forward)."""
    C = params["wq"].shape[0]
    hs = C // n_head
    scale = 1.0 / math.sqrt(hs)
    # Fold the attention scale into the Q projection (free at runtime).
    wqkv = jnp.concatenate(
        [params["wq"] * scale, params["wk"], params["wv"]],
        axis=1).astype(jnp.bfloat16)                                  # (C, 3C)
    bqkv = jnp.concatenate(
        [params["bq"] * scale, params["bk"], params["bv"]]
    ).reshape(1, 3 * C).astype(jnp.float32)                           # (1, 3C)
    wp = params["wp"].astype(jnp.bfloat16)                            # (C, C)
    bp = params["bp"].reshape(1, C).astype(jnp.float32)               # (1, C)
    return {"wqkv": wqkv, "bqkv": bqkv, "wp": wp, "bp": bp}


def multi_head_attention(x, prepared, *, n_head, is_masked=False):
    """x: (B, T, C) float32.  `prepared`: output of prepare_mha_params()."""
    B, T, C = x.shape
    assert C % n_head == 0
    hs = C // n_head

    bt = _pick_batch_fold(B, T)
    q_tile = _pick_q_tile(T)

    kernel = functools.partial(_mha_kernel, n_head=n_head,
                               is_masked=is_masked, q_tile=q_tile)

    # Advisory cost estimate for the XLA scheduler.
    flops = 2 * B * T * C * (4 * C) + 4 * B * n_head * T * T * hs
    transcendentals = B * n_head * T * T
    bytes_accessed = (2 * B * T * C * 4                               # x in + out
                      + (prepared["wqkv"].size + prepared["wp"].size) * 2
                      + (prepared["bqkv"].size + prepared["bp"].size) * 4)

    return pl.pallas_call(
        kernel,
        out_shape=jax.ShapeDtypeStruct((B, T, C), x.dtype),
        grid_spec=pltpu.PrefetchScalarGridSpec(
            num_scalar_prefetch=0,
            grid=(B // bt,),
            in_specs=[
                pl.BlockSpec((bt, T, C), lambda b: (b, 0, 0)),        # x (f32)
                # Grid-invariant weights / biases (same block every step).
                pl.BlockSpec((C, 3 * C), lambda b: (0, 0)),           # fused QKV w
                pl.BlockSpec((1, 3 * C), lambda b: (0, 0)),           # fused QKV b
                pl.BlockSpec((C, C), lambda b: (0, 0)),               # proj w
                pl.BlockSpec((1, C), lambda b: (0, 0)),               # proj b
            ],
            out_specs=pl.BlockSpec((bt, T, C), lambda b: (b, 0, 0)),
        ),
        compiler_params=pltpu.CompilerParams(
            dimension_semantics=("parallel",),
            vmem_limit_bytes=_vmem_limit_bytes()),
        cost_estimate=pl.CostEstimate(
            flops=int(flops),
            transcendentals=int(transcendentals),
            bytes_accessed=int(bytes_accessed)),
    )(x, prepared["wqkv"], prepared["bqkv"], prepared["wp"], prepared["bp"])


def _reference(x, params, *, n_head, is_masked):
    """Pure-JAX f32 reference matching the PyTorch forward (eval mode)."""
    B, T, C = x.shape
    hs = C // n_head
    q = x @ params["wq"] + params["bq"]
    k = x @ params["wk"] + params["bk"]
    v = x @ params["wv"] + params["bv"]
    q = q.reshape(B, T, n_head, hs).transpose(0, 2, 1, 3)
    k = k.reshape(B, T, n_head, hs).transpose(0, 2, 1, 3)
    v = v.reshape(B, T, n_head, hs).transpose(0, 2, 1, 3)
    att = jnp.einsum("bhqd,bhkd->bhqk", q, k) / math.sqrt(hs)
    if is_masked:
        mask = jnp.tril(jnp.ones((T, T)))
        att = jnp.where(mask == 0, -jnp.inf, att)
    att = jax.nn.softmax(att, axis=-1)
    y = jnp.einsum("bhqk,bhkd->bhqd", att, v)
    y = y.transpose(0, 2, 1, 3).reshape(B, T, C)
    return y @ params["wp"] + params["bp"]


if __name__ == "__main__":
    # Small config consistent with the module: n_embd=32, n_head=4, block_size=8.
    B, T, C, n_head = 2, 8, 32, 4

    key = jax.random.PRNGKey(0)
    keys = jax.random.split(key, 9)
    bound = 1.0 / math.sqrt(C)   # PyTorch nn.Linear default init scale

    def u(k, shape):
        return jax.random.uniform(k, shape, jnp.float32, -bound, bound)

    params = {
        "wq": u(keys[0], (C, C)), "bq": u(keys[1], (C,)),
        "wk": u(keys[2], (C, C)), "bk": u(keys[3], (C,)),
        "wv": u(keys[4], (C, C)), "bv": u(keys[5], (C,)),
        "wp": u(keys[6], (C, C)), "bp": u(keys[7], (C,)),
    }
    x = jax.random.normal(keys[8], (B, T, C), jnp.float32)

    # Weight fusion / bf16 cast happens ONCE, outside the per-call hot path.
    prepared = prepare_mha_params(params, n_head=n_head)

    ok = True
    for is_masked in (True, False):   # causal (GPT-style) and unmasked variants
        y = multi_head_attention(x, prepared, n_head=n_head, is_masked=is_masked)
        y = jax.block_until_ready(y)
        y_ref = _reference(x, params, n_head=n_head, is_masked=is_masked)
        # bf16 MXU inputs (f32 accumulation) -> looser tolerance vs f32 reference.
        ok = ok and bool(jnp.allclose(y, y_ref, atol=2e-2, rtol=2e-2))

    assert ok, "mismatch vs reference"
    print("KERNEL_OK")
</pallas_src>

<mosaic_0001>
module attributes {stable_mosaic.version = 11 : i64} {
  func.func @_mha_kernel(%arg0: i32, %arg1: memref<1x8x32xf32, #tpu.memory_space<vmem>>, %arg2: memref<32x96xbf16, #tpu.memory_space<vmem>>, %arg3: memref<1x96xf32, #tpu.memory_space<vmem>>, %arg4: memref<32x32xbf16, #tpu.memory_space<vmem>>, %arg5: memref<1x32xf32, #tpu.memory_space<vmem>>, %arg6: memref<1x8x32xf32, #tpu.memory_space<vmem>>) attributes {dimension_semantics = [#tpu.dimension_semantics<parallel>], iteration_bounds = array<i64: 2>, scalar_prefetch = 0 : i64, scratch_operands = 0 : i64, tpu.core_type = #tpu.core_type<tc>, window_params = [{transform_indices = @transform_0, window_bounds = array<i64: 1, 8, 32>}, {pipeline_mode = #tpu.pipeline_mode<synchronous>, transform_indices = @transform_1, window_bounds = array<i64: 32, 96>}, {pipeline_mode = #tpu.pipeline_mode<synchronous>, transform_indices = @transform_2, window_bounds = array<i64: 1, 96>}, {pipeline_mode = #tpu.pipeline_mode<synchronous>, transform_indices = @transform_3, window_bounds = array<i64: 32, 32>}, {pipeline_mode = #tpu.pipeline_mode<synchronous>, transform_indices = @transform_4, window_bounds = array<i64: 1, 32>}, {transform_indices = @transform_5, window_bounds = array<i64: 1, 8, 32>}]} {
    %c0 = arith.constant 0 : index
    %c0_0 = arith.constant 0 : index
    %c0_1 = arith.constant 0 : index
    %0 = vector.load %arg1[%c0, %c0_0, %c0_1] : memref<1x8x32xf32, #tpu.memory_space<vmem>>, vector<1x8x32xf32>
    %1 = arith.truncf %0 : vector<1x8x32xf32> to vector<1x8x32xbf16>
    %2 = vector.shape_cast %1 : vector<1x8x32xbf16> to vector<8x32xbf16>
    %c0_2 = arith.constant 0 : index
    %c0_3 = arith.constant 0 : index
    %3 = vector.load %arg2[%c0_2, %c0_3] : memref<32x96xbf16, #tpu.memory_space<vmem>>, vector<32x96xbf16>
    %cst = arith.constant dense<0.000000e+00> : vector<8x96xf32>
    %4 = tpu.matmul %2, %3, %cst {dimension_numbers = #tpu.dot_dimension_numbers<[1], [0], [0], [1], [0, 0, 1, 1], [], []>} : vector<8x32xbf16>, vector<32x96xbf16>, vector<8x96xf32> -> vector<8x96xf32>
    %c0_4 = arith.constant 0 : index
    %c0_5 = arith.constant 0 : index
    %5 = vector.load %arg3[%c0_4, %c0_5] : memref<1x96xf32, #tpu.memory_space<vmem>>, vector<1x96xf32>
    %6 = vector.shape_cast %5 : vector<1x96xf32> to vector<96xf32>
    %7 = vector.shape_cast %6 : vector<96xf32> to vector<1x96xf32>
    %8 = vector.broadcast %7 : vector<1x96xf32> to vector<8x96xf32>
    %9 = arith.addf %4, %8 : vector<8x96xf32>
    %10 = vector.extract_strided_slice %9 {offsets = [0, 0], sizes = [8, 32], strides = [1, 1]} : vector<8x96xf32> to vector<8x32xf32>
    %11 = arith.truncf %10 : vector<8x32xf32> to vector<8x32xbf16>
    %12 = vector.shape_cast %11 : vector<8x32xbf16> to vector<1x8x4x8xbf16>
    %13 = tpu.transpose %12, [0, 2, 1, 3] : vector<1x8x4x8xbf16> -> vector<1x4x8x8xbf16>
    %14 = vector.shape_cast %13 : vector<1x4x8x8xbf16> to vector<4x8x8xbf16>
    %15 = vector.extract_strided_slice %9 {offsets = [0, 32], sizes = [8, 32], strides = [1, 1]} : vector<8x96xf32> to vector<8x32xf32>
    %16 = arith.truncf %15 : vector<8x32xf32> to vector<8x32xbf16>
    %17 = vector.shape_cast %16 : vector<8x32xbf16> to vector<1x8x4x8xbf16>
    %18 = tpu.transpose %17, [0, 2, 1, 3] : vector<1x8x4x8xbf16> -> vector<1x4x8x8xbf16>
    %19 = vector.shape_cast %18 : vector<1x4x8x8xbf16> to vector<4x8x8xbf16>
    %20 = vector.extract_strided_slice %9 {offsets = [0, 64], sizes = [8, 32], strides = [1, 1]} : vector<8x96xf32> to vector<8x32xf32>
    %21 = arith.truncf %20 : vector<8x32xf32> to vector<8x32xbf16>
    %22 = vector.shape_cast %21 : vector<8x32xbf16> to vector<1x8x4x8xbf16>
    %23 = tpu.transpose %22, [0, 2, 1, 3] : vector<1x8x4x8xbf16> -> vector<1x4x8x8xbf16>
    %24 = vector.shape_cast %23 : vector<1x4x8x8xbf16> to vector<4x8x8xbf16>
    "tpu.trace_start"() <{level = 10 : i32, message = "bqd,bkd->bqk"}> : () -> ()
    %cst_6 = arith.constant dense<0.000000e+00> : vector<4x8x8xf32>
    %25 = tpu.matmul %14, %19, %cst_6 {dimension_numbers = #tpu.dot_dimension_numbers<[2], [2], [1], [1], [0, 0, 0, 1, 1, 1], [0], [0]>} : vector<4x8x8xbf16>, vector<4x8x8xbf16>, vector<4x8x8xf32> -> vector<4x8x8xf32>
    "tpu.trace_stop"() : () -> ()
    %26 = tpu.iota {dimensions = array<i32: 0>} : vector<8x8xi32>
    %c0_i32 = arith.constant 0 : i32
    %27 = vector.broadcast %c0_i32 : i32 to vector<8x8xi32>
    %28 = arith.addi %27, %26 : vector<8x8xi32>
    %29 = tpu.iota {dimensions = array<i32: 1>} : vector<8x8xi32>
    %30 = arith.cmpi sle, %29, %28 : vector<8x8xi32>
    %31 = vector.shape_cast %30 : vector<8x8xi1> to vector<1x8x8xi1>
    %cst_7 = arith.constant -1.000000e+30 : f32
    %32 = vector.shape_cast %31 : vector<1x8x8xi1> to vector<1x8x8xi1>
    %33 = vector.broadcast %32 : vector<1x8x8xi1> to vector<4x8x8xi1>
    %34 = vector.broadcast %cst_7 : f32 to vector<4x8x8xf32>
    %35 = arith.select %33, %25, %34 : vector<4x8x8xi1>, vector<4x8x8xf32>
    %cst_8 = arith.constant dense<0xFF800000> : vector<4x8xf32>
    %36 = vector.multi_reduction <maximumf>, %35, %cst_8 [2] : vector<4x8x8xf32> to vector<4x8xf32>
    %37 = vector.shape_cast %36 : vector<4x8xf32> to vector<4x8x1xf32>
    %38 = vector.broadcast %37 : vector<4x8x1xf32> to vector<4x8x8xf32>
    %39 = arith.subf %35, %38 : vector<4x8x8xf32>
    %40 = math.exp %39 : vector<4x8x8xf32>
    %cst_9 = arith.constant dense<0.000000e+00> : vector<4x8xf32>
    %41 = vector.multi_reduction <add>, %40, %cst_9 [2] : vector<4x8x8xf32> to vector<4x8xf32>
    %42 = vector.shape_cast %41 : vector<4x8xf32> to vector<4x8x1xf32>
    %43 = tpu.reciprocal %42 {approx = true} : vector<4x8x1xf32> -> vector<4x8x1xf32>
    %44 = vector.broadcast %43 : vector<4x8x1xf32> to vector<4x8x8xf32>
    %45 = arith.mulf %40, %44 : vector<4x8x8xf32>
    %46 = arith.truncf %45 : vector<4x8x8xf32> to vector<4x8x8xbf16>
    "tpu.trace_start"() <{level = 10 : i32, message = "bqk,bkd->bqd"}> : () -> ()
    %cst_10 = arith.constant dense<0.000000e+00> : vector<4x8x8xf32>
    %47 = tpu.matmul %46, %24, %cst_10 {dimension_numbers = #tpu.dot_dimension_numbers<[2], [1], [1], [2], [0, 0, 0, 1, 1, 2], [0], [0]>} : vector<4x8x8xbf16>, vector<4x8x8xbf16>, vector<4x8x8xf32> -> vector<4x8x8xf32>
    "tpu.trace_stop"() : () -> ()
    %48 = arith.truncf %47 : vector<4x8x8xf32> to vector<4x8x8xbf16>
    %49 = vector.shape_cast %48 : vector<4x8x8xbf16> to vector<1x4x8x8xbf16>
    %50 = tpu.transpose %49, [0, 2, 1, 3] : vector<1x4x8x8xbf16> -> vector<1x8x4x8xbf16>
    %51 = vector.shape_cast %50 : vector<1x8x4x8xbf16> to vector<8x32xbf16>
    %c0_11 = arith.constant 0 : index
    %c0_12 = arith.constant 0 : index
    %52 = vector.load %arg4[%c0_11, %c0_12] : memref<32x32xbf16, #tpu.memory_space<vmem>>, vector<32x32xbf16>
    %cst_13 = arith.constant dense<0.000000e+00> : vector<8x32xf32>
    %53 = tpu.matmul %51, %52, %cst_13 {dimension_numbers = #tpu.dot_dimension_numbers<[1], [0], [0], [1], [0, 0, 1, 1], [], []>} : vector<8x32xbf16>, vector<32x32xbf16>, vector<8x32xf32> -> vector<8x32xf32>
    %c0_14 = arith.constant 0 : index
    %c0_15 = arith.constant 0 : index
    %54 = vector.load %arg5[%c0_14, %c0_15] : memref<1x32xf32, #tpu.memory_space<vmem>>, vector<1x32xf32>
    %55 = vector.shape_cast %54 : vector<1x32xf32> to vector<32xf32>
    %56 = vector.shape_cast %55 : vector<32xf32> to vector<1x32xf32>
    %57 = vector.broadcast %56 : vector<1x32xf32> to vector<8x32xf32>
    %58 = arith.addf %53, %57 : vector<8x32xf32>
    %59 = vector.shape_cast %58 : vector<8x32xf32> to vector<1x8x32xf32>
    %c0_16 = arith.constant 0 : index
    %c0_17 = arith.constant 0 : index
    %c0_18 = arith.constant 0 : index
    %60 = vector.load %arg6[%c0_16, %c0_17, %c0_18] : memref<1x8x32xf32, #tpu.memory_space<vmem>>, vector<1x8x32xf32>
    tpu.vector_store %arg6[%c0_16, %c0_17, %c0_18], %59 {strides = array<i32>} : memref<1x8x32xf32, #tpu.memory_space<vmem>>, vector<1x8x32xf32>,
    return
  }
  func.func @transform_0(%arg0: i32) -> (i32, i32, i32) {
    %c0_i32 = arith.constant 0 : i32
    %c0_i32_0 = arith.constant 0 : i32
    %c0_i32_1 = arith.constant 0 : i32
    return %arg0, %c0_i32, %c0_i32_0 : i32, i32, i32
  }
  func.func @transform_1(%arg0: i32) -> (i32, i32) {
    %c0_i32 = arith.constant 0 : i32
    %c0_i32_0 = arith.constant 0 : i32
    %c0_i32_1 = arith.constant 0 : i32
    return %c0_i32, %c0_i32_0 : i32, i32
  }
  func.func @transform_2(%arg0: i32) -> (i32, i32) {
    %c0_i32 = arith.constant 0 : i32
    %c0_i32_0 = arith.constant 0 : i32
    %c0_i32_1 = arith.constant 0 : i32
    return %c0_i32, %c0_i32_0 : i32, i32
  }
  func.func @transform_3(%arg0: i32) -> (i32, i32) {
    %c0_i32 = arith.constant 0 : i32
    %c0_i32_0 = arith.constant 0 : i32
    %c0_i32_1 = arith.constant 0 : i32
    return %c0_i32, %c0_i32_0 : i32, i32
  }
  func.func @transform_4(%arg0: i32) -> (i32, i32) {
    %c0_i32 = arith.constant 0 : i32
    %c0_i32_0 = arith.constant 0 : i32
    %c0_i32_1 = arith.constant 0 : i32
    return %c0_i32, %c0_i32_0 : i32, i32
  }
  func.func @transform_5(%arg0: i32) -> (i32, i32, i32) {
    %c0_i32 = arith.constant 0 : i32
    %c0_i32_0 = arith.constant 0 : i32
    %c0_i32_1 = arith.constant 0 : i32
    return %arg0, %c0_i32, %c0_i32_0 : i32, i32, i32
  }
}

</mosaic_0001>

<llo_original>
// kernel: tpu_custom_call.1
$region0: #{tpu_custom_call.1}
  #allocation0 [shape = 'u32[]', space=smem, size = 0x4, offset = 0x4, fixed_abs, tag = 'smem constant byte address 0x4 - core index']
  #allocation1 [shape = 'u32[72,128]{1,0:T(1,128)}', space=vmem, size = 0x9000, scoped, tag = 'internal scratch']
  %s0 = inlined_call_operand.hbm [shape: f32[2,8,32], index: 0, kind: input, shape index: {}]
  %s1 = inlined_call_operand.hbm [shape: bf16[32,96], index: 1, kind: input, shape index: {}]
  %s2 = inlined_call_operand.vmem [shape: f32[1,96], index: 2, kind: input, shape index: {}]
  %s3 = inlined_call_operand.hbm [shape: bf16[32,32], index: 3, kind: input, shape index: {}]
  %s4 = inlined_call_operand.vmem [shape: f32[1,32], index: 4, kind: input, shape index: {}]
  %s5 = inlined_call_operand.hbm [shape: f32[2,8,32], index: 5, kind: output, shape index: {}]
  %s6 = sld [smem:[#allocation0]]
  $region65: #{tpu_custom_call.1} parent=0
    _
  %s8 = ssub.s32 1, %s6
  %s9 = scalar_select 0, %s8, %s6
  $region1: #{tpu_custom_call.1} parent=0
    #allocation2 [shape = 'u8[8192]{0}', space=vmem, size = 0x2000, scoped, tag = 'input window, operand 0']
    #allocation3 [shape = 's32[2]{0}', space=sflag, size = 0x8, scoped, tag = 'scoped memory for tpu_custom_call.1']
    #allocation4 [shape = 's32[2]{0}', space=sflag, size = 0x8, scoped, tag = 'scoped memory for tpu_custom_call.1']
    #allocation5 [shape = 'u8[8192]{0}', space=vmem, size = 0x2000, scoped, tag = 'input window, operand 1, single buffered']
    #allocation6 [shape = 's32[1]{0}', space=sflag, size = 0x4, scoped, tag = 'scoped memory for tpu_custom_call.1']
    #allocation7 [shape = 'u8[8192]{0}', space=vmem, size = 0x2000, scoped, tag = 'input window, operand 3, single buffered']
    #allocation8 [shape = 'u8[8192]{0}', space=vmem, size = 0x2000, scoped, tag = 'output window, operand 0']
    %10 = vsyncpa [#allocation3], 0
    %s11 = scalar_lea.sflag [#allocation3], 1
    %12 = vsyncpa %s11, 0
    %13 = vsyncpa [#allocation6], 0
    %14 = vsyncpa [#allocation4], 0
    %s15 = scalar_lea.sflag [#allocation4], 1
    %16 = vsyncpa %s15, 0
    loop: start=0, step=1, limit=4
    $region2: #{tpu_custom_call.1} parent=1 // loop_pre_header
      _
    $region3: #{tpu_custom_call.1} parent=1 // loop_header
      %s18 = sphi 0, %s22
      %p19 = scmp.ge.s32.totalorder %s18, 4
      %s28 = sphi 0, %s30
      %s31 = sphi 0, %s28
      %s32 = sphi 0, %s31
      %s48 = sphi 0, %s32
      %s52 = sphi 0, %s52
      %s54 = sphi 0, %s52
      %s55 = sphi 0, %s54
      %s69 = sphi 0, %s55
      %s73 = sphi 0, %s73
      %s75 = sphi 0, %s73
      %s76 = sphi 0, %s75
      %s90 = sphi 0, %s76
      %s94 = sphi 0, %s94
      %s96 = sphi 0, %s94
      %s97 = sphi 0, %s96
      %s111 = sphi 0, %s97
      %s115 = sphi 0, %s115
      %s117 = sphi 0, %s115
      %s118 = sphi 0, %s117
      %s132 = sphi 0, %s118
      %s138 = sphi 0, %s140
      %s141 = sphi 0, %s138
      %s142 = sphi 0, %s141
      %s158 = sphi 0, %s142
    $region4: #{tpu_custom_call.1} parent=1 // loop_header_branch
      %21 = sbr.rel (%p19) target = $region8
    $region5: #{tpu_custom_call.1} parent=1 // loop_body
      %s23 = ssub.s32 %s18, 1
      %s24 = ssub.s32 %s18, 2
      %s25 = sadd.s32 %s18, 1
      %s26 = ssub.s32 %s18, %s25
      %p27 = scmp.eq.s32.totalorder %s26, 0
      %s29 = sadd.s32 %s28, 1
      %s30 = scalar_select %p27, %s28, %s29
      %p33 = pneg %p27
      %p34 = scmp.eq.s32.totalorder %s18, 1
      %p35 = por %p33, %p34
      %p36 = scmp.ne.s32.totalorder %s28, %s31
      %p37 = scmp.eq.s32.totalorder %s18, 0
      %p38 = por %p36, %p37
      %p39 = scmp.ne.s32.totalorder %s28, %s31
      %p40 = scmp.eq.s32.totalorder %s23, 1
      %p41 = por %p39, %p40
      %p42 = scmp.ne.s32.totalorder %s31, %s32
      %p43 = scmp.eq.s32.totalorder %s23, 0
      %p44 = por %p42, %p43
      %p45 = scmp.ne.s32.totalorder %s31, %s32
      %p46 = scmp.eq.s32.totalorder %s24, 1
      %p47 = por %p45, %p46
      %p49 = scmp.ne.s32.totalorder %s32, %s48
      %p50 = scmp.eq.s32.totalorder %s24, 0
      %p51 = por %p49, %p50
      %s53 = sadd.s32 %s52, 1
      %p56 = scmp.eq.s32.totalorder %s18, 1
      %p57 = scmp.ne.s32.totalorder %s52, %s54
      %p58 = scmp.eq.s32.totalorder %s18, 0
      %p59 = por %p57, %p58
      %p60 = scmp.ne.s32.totalorder %s52, %s54
      %p61 = scmp.eq.s32.totalorder %s23, 1
      %p62 = por %p60, %p61
      %p63 = scmp.ne.s32.totalorder %s54, %s55
      %p64 = scmp.eq.s32.totalorder %s23, 0
      %p65 = por %p63, %p64
      %p66 = scmp.ne.s32.totalorder %s54, %s55
      %p67 = scmp.eq.s32.totalorder %s24, 1
      %p68 = por %p66, %p67
      %p70 = scmp.ne.s32.totalorder %s55, %s69
      %p71 = scmp.eq.s32.totalorder %s24, 0
      %p72 = por %p70, %p71
      %s74 = sadd.s32 %s73, 1
      %p77 = scmp.eq.s32.totalorder %s18, 1
      %p78 = scmp.ne.s32.totalorder %s73, %s75
      %p79 = scmp.eq.s32.totalorder %s18, 0
      %p80 = por %p78, %p79
      %p81 = scmp.ne.s32.totalorder %s73, %s75
      %p82 = scmp.eq.s32.totalorder %s23, 1
      %p83 = por %p81, %p82
      %p84 = scmp.ne.s32.totalorder %s75, %s76
      %p85 = scmp.eq.s32.totalorder %s23, 0
      %p86 = por %p84, %p85
      %p87 = scmp.ne.s32.totalorder %s75, %s76
      %p88 = scmp.eq.s32.totalorder %s24, 1
      %p89 = por %p87, %p88
      %p91 = scmp.ne.s32.totalorder %s76, %s90
      %p92 = scmp.eq.s32.totalorder %s24, 0
      %p93 = por %p91, %p92
      %s95 = sadd.s32 %s94, 1
      %p98 = scmp.eq.s32.totalorder %s18, 1
      %p99 = scmp.ne.s32.totalorder %s94, %s96
      %p100 = scmp.eq.s32.totalorder %s18, 0
      %p101 = por %p99, %p100
      %p102 = scmp.ne.s32.totalorder %s94, %s96
      %p103 = scmp.eq.s32.totalorder %s23, 1
      %p104 = por %p102, %p103
      %p105 = scmp.ne.s32.totalorder %s96, %s97
      %p106 = scmp.eq.s32.totalorder %s23, 0
      %p107 = por %p105, %p106
      %p108 = scmp.ne.s32.totalorder %s96, %s97
      %p109 = scmp.eq.s32.totalorder %s24, 1
      %p110 = por %p108, %p109
      %p112 = scmp.ne.s32.totalorder %s97, %s111
      %p113 = scmp.eq.s32.totalorder %s24, 0
      %p114 = por %p112, %p113
      %s116 = sadd.s32 %s115, 1
      %p119 = scmp.eq.s32.totalorder %s18, 1
      %p120 = scmp.ne.s32.totalorder %s115, %s117
      %p121 = scmp.eq.s32.totalorder %s18, 0
      %p122 = por %p120, %p121
      %p123 = scmp.ne.s32.totalorder %s115, %s117
      %p124 = scmp.eq.s32.totalorder %s23, 1
      %p125 = por %p123, %p124
      %p126 = scmp.ne.s32.totalorder %s117, %s118
      %p127 = scmp.eq.s32.totalorder %s23, 0
      %p128 = por %p126, %p127
      %p129 = scmp.ne.s32.totalorder %s117, %s118
      %p130 = scmp.eq.s32.totalorder %s24, 1
      %p131 = por %p129, %p130
      %p133 = scmp.ne.s32.totalorder %s118, %s132
      %p134 = scmp.eq.s32.totalorder %s24, 0
      %p135 = por %p133, %p134
      %s136 = ssub.s32 %s18, %s25
      %p137 = scmp.eq.s32.totalorder %s136, 0
      %s139 = sadd.s32 %s138, 1
      %s140 = scalar_select %p137, %s138, %s139
      %p143 = pneg %p137
      %p144 = scmp.eq.s32.totalorder %s18, 1
      %p145 = por %p143, %p144
      %p146 = scmp.ne.s32.totalorder %s138, %s141
      %p147 = scmp.eq.s32.totalorder %s18, 0
      %p148 = por %p146, %p147
      %p149 = scmp.ne.s32.totalorder %s138, %s141
      %p150 = scmp.eq.s32.totalorder %s23, 1
      %p151 = por %p149, %p150
      %p152 = scmp.ne.s32.totalorder %s141, %s142
      %p153 = scmp.eq.s32.totalorder %s23, 0
      %p154 = por %p152, %p153
      %p155 = scmp.ne.s32.totalorder %s141, %s142
      %p156 = scmp.eq.s32.totalorder %s24, 1
      %p157 = por %p155, %p156
      %p159 = scmp.ne.s32.totalorder %s142, %s158
      %p160 = scmp.eq.s32.totalorder %s24, 0
      %p161 = por %p159, %p160
      %p162 = scmp.le.s32.totalorder 1, %s18
      %p163 = scmp.lt.s32.totalorder %s18, 3
      %p164 = pnand %p162, %p163
      %p165 = pneg %p164
      // Predicated region
      $region9: #{tpu_custom_call.1} parent=5 // pred_check
        _
      $region10: #{tpu_custom_call.1} parent=5 // pred_check_branch
        %167 = sbr.rel (%p164) target = $region12
      $region11: #{tpu_custom_call.1} parent=5 // pred_region
        %s168 = ssub.s32 %s18, 1
        // Predicated region
        $region13: #{tpu_custom_call.1} parent=11 // pred_check
          %p169 = pneg %p65
        $region14: #{tpu_custom_call.1} parent=11 // pred_check_branch
          %171 = sbr.rel (%p169) target = $region16
        $region15: #{tpu_custom_call.1} parent=11 // pred_region
          %173 = vsyncadd [#allocation6], 0
          %s174 = sshll.u32 %s1, 4
          %s175 = int_to_ptr.hbm [resolvable:$true] %s174
          %s176 = sshll.u32 [#allocation5], 4
          %s177 = int_to_ptr.vmem [resolvable:$true] %s176
          %182 = dma.hbm_to_vmem [thread:$0]  %s175, 256, %s177, [#allocation6], 64, 64, 4
        $region16: #{tpu_custom_call.1} parent=11 // pred_fallthru
          _
        // Predicated region
        $region17: #{tpu_custom_call.1} parent=11 // pred_check
          %p183 = pneg %p86
        $region18: #{tpu_custom_call.1} parent=11 // pred_check_branch
          %185 = sbr.rel (%p183) target = $region20
        $region19: #{tpu_custom_call.1} parent=11 // pred_region
          _
        $region20: #{tpu_custom_call.1} parent=11 // pred_fallthru
          _
        // Predicated region
        $region21: #{tpu_custom_call.1} parent=11 // pred_check
          %p186 = pneg %p107
        $region22: #{tpu_custom_call.1} parent=11 // pred_check_branch
          %188 = sbr.rel (%p186) target = $region24
        $region23: #{tpu_custom_call.1} parent=11 // pred_region
          %190 = vsyncadd [#allocation6], 0
          %s191 = sshll.u32 %s3, 4
          %s192 = int_to_ptr.hbm [resolvable:$true] %s191
          %s193 = sshll.u32 [#allocation7], 4
          %s194 = int_to_ptr.vmem [resolvable:$true] %s193
          %199 = dma.hbm_to_vmem [thread:$0]  %s192, 256, %s194, [#allocation6], 64, 64, 4
        $region24: #{tpu_custom_call.1} parent=11 // pred_fallthru
          _
        // Predicated region
        $region25: #{tpu_custom_call.1} parent=11 // pred_check
          %p200 = pneg %p128
        $region26: #{tpu_custom_call.1} parent=11 // pred_check_branch
          %202 = sbr.rel (%p200) target = $region28
        $region27: #{tpu_custom_call.1} parent=11 // pred_region
          _
        $region28: #{tpu_custom_call.1} parent=11 // pred_fallthru
          _
      $region12: #{tpu_custom_call.1} parent=5 // pred_fallthru
        _
      %p203 = scmp.lt.s32.totalorder %s18, 2
      // Predicated region
      $region29: #{tpu_custom_call.1} parent=5 // pred_check
        %p204 = pneg %p203
      $region30: #{tpu_custom_call.1} parent=5 // pred_check_branch
        %206 = sbr.rel (%p204) target = $region32
      $region31: #{tpu_custom_call.1} parent=5 // pred_region
        // Predicated region
        $region33: #{tpu_custom_call.1} parent=31 // pred_check
          %p207 = pneg %p38
        $region34: #{tpu_custom_call.1} parent=31 // pred_check_branch
          %209 = sbr.rel (%p207) target = $region36
        $region35: #{tpu_custom_call.1} parent=31 // pred_region
          %s210 = sand.u32 %s28, 1
          %s211 = scalar_lea.sflag [#allocation3], %s210
          %s212 = sand.u32 %s28, 1
          %s213 = smul.addr %s212, 8
          %s214 = scalar_lea.vmem [#allocation2], %s213
          %216 = vsyncadd %s211, 0
          %s217 = smul.addr %s18, 8
          %s218 = scalar_lea.hbm %s0, %s217
          %s220 = sshll.u32 %s218, 4
          %s221 = int_to_ptr.hbm [resolvable:$true] %s220
          %s222 = sshll.u32 %s214, 4
          %s223 = int_to_ptr.vmem [resolvable:$true] %s222
          %225 = dma.hbm_to_vmem [thread:$0]  %s221, 128, %s223, %s211
        $region36: #{tpu_custom_call.1} parent=31 // pred_fallthru
          _
      $region32: #{tpu_custom_call.1} parent=5 // pred_fallthru
        _
      %p226 = scmp.le.s32.totalorder 1, %s18
      %p227 = scmp.lt.s32.totalorder %s18, 3
      %p228 = pnand %p226, %p227
      %p229 = pneg %p228
      // Predicated region
      $region37: #{tpu_custom_call.1} parent=5 // pred_check
        _
      $region38: #{tpu_custom_call.1} parent=5 // pred_check_branch
        %231 = sbr.rel (%p228) target = $region40
      $region39: #{tpu_custom_call.1} parent=5 // pred_region
        %s232 = ssub.s32 %s18, 1
        %s233 = sand.u32 %s31, 1
        %s234 = scalar_lea.sflag [#allocation3], %s233
        %s235 = sand.u32 %s31, 1
        %s236 = smul.addr %s235, 8
        %s237 = scalar_lea.vmem [#allocation2], %s236
        // Predicated region
        $region41: #{tpu_custom_call.1} parent=39 // pred_check
          %p238 = pneg %p44
        $region42: #{tpu_custom_call.1} parent=39 // pred_check_branch
          %240 = sbr.rel (%p238) target = $region44
        $region43: #{tpu_custom_call.1} parent=39 // pred_region
          %242 = dma.done %s234, 128
        $region44: #{tpu_custom_call.1} parent=39 // pred_fallthru
          _
        // Predicated region
        $region45: #{tpu_custom_call.1} parent=39 // pred_check
          %p243 = pneg %p65
        $region46: #{tpu_custom_call.1} parent=39 // pred_check_branch
          %245 = sbr.rel (%p243) target = $region48
        $region47: #{tpu_custom_call.1} parent=39 // pred_region
          %247 = dma.done [#allocation6], 256
        $region48: #{tpu_custom_call.1} parent=39 // pred_fallthru
          _
        // Predicated region
        $region49: #{tpu_custom_call.1} parent=39 // pred_check
          %p248 = pneg %p107
        $region50: #{tpu_custom_call.1} parent=39 // pred_check_branch
          %250 = sbr.rel (%p248) target = $region52
        $region51: #{tpu_custom_call.1} parent=39 // pred_region
          %252 = dma.done [#allocation6], 256
        $region52: #{tpu_custom_call.1} parent=39 // pred_fallthru
          _
        %s253 = sand.u32 %s31, 1
        %s254 = scalar_lea.sflag [#allocation3], %s253
        %s255 = sand.u32 %s31, 1
        %s256 = smul.addr %s255, 8
        %s257 = scalar_lea.vmem [#allocation2], %s256
        %p258 = pneg %p44
        %p259 = pneg %p41
        %p260 = pneg %p65
        %p261 = pneg %p62
        %p262 = pneg %p86
        %p263 = pneg %p83
        %p264 = pneg %p107
        %p265 = pneg %p104
        %p266 = pneg %p128
        %p267 = pneg %p125
        %p268 = pneg %p154
        %p269 = pneg %p151
        %s270 = sand.u32 %s141, 1
        %s271 = scalar_lea.sflag [#allocation4], %s270
        %s272 = sand.u32 %s141, 1
        %s273 = smul.addr %s272, 8
        %s274 = scalar_lea.vmem [#allocation8], %s273
        %v276 = vld [vmem:[%s237] sm:$0xff]
        %v277 = vpack.c.bf16 %v276, %v276
        %v278 = vld [vmem:[#allocation5] sm:$0xf]
        %v279 = vld [vmem:[#allocation5 + $0x4] sm:$0xf]
        %v280 = vld [vmem:[#allocation5 + $0x8] sm:$0xf]
        %v281 = vld [vmem:[#allocation5 + $0xc] sm:$0xf]
        %v282 = vld [vmem:[%s2] sm:$0x1]
        %v284 = vperm.slane %v282, 0
        %v290 = vunpack.c.l.b16 %v278
        %v291 = vunpack.c.l.b16 %v279
        %v292 = vunpack.c.l.b16 %v280
        %v293 = vunpack.c.l.b16 %v281
        %v294 = vpack.c.b16 %v291, %v290
        %v295 = vpack.c.b16 %v293, %v292
        %vm298 = vcmask 261120
        %v300 = vsel %vm298, %v277, 0
        %302 = vmatpush.bf16.msra.mxu0 0
        %303 = vmatpush.bf16.msra.mxu0 0
        %304 = vmatpush.bf16.msra.mxu0 0
        %305 = vmatpush.bf16.msra.mxu0 0
        %306 = vmatpush.bf16.msra.mxu0 0
        %307 = vmatpush.bf16.msra.mxu0 0
        %308 = vmatpush.bf16.msra.mxu0 %v295
        %309 = vmatpush.bf16.msra.mxu0 %v294
        %310 = vmatmul.bf16.gmra.mxu0 %v300
        %v311 = vpop.f32.mrf.mxu0
        %v312 = vadd.f32 %v284, %v311
        %v313 = vpop.f32.mrf.mxu0
        %314 = vdwg.mxu0
        %v315 = vpack.c.bf16 %v312, %v312
        %317 = vrot.lane.b32.xlu0 %v315, 120
        %v318 = vpop.permute.xlu0 %317
        %319 = vrot.lane.b32.xlu0 %v315, 112
        %v320 = vpop.permute.xlu0 %319
        %321 = vrot.lane.b32.xlu0 %v315, 104
        %v322 = vpop.permute.xlu0 %321
        %v325 = vpack.i.b16 %v318, %v315
        %v326 = vshrl.u32 %v315, 16
        %v327 = vshrl.u32 %v318, 16
        %v328 = vpack.i.b16 %v327, %v326
        %v331 = vpack.i.b16 %v322, %v320
        %v332 = vshrl.u32 %v320, 16
        %v333 = vshrl.u32 %v322, 16
        %v334 = vpack.i.b16 %v333, %v332
        %v337 = vunpack.c.l.s4 1983009808
        %v338 = vunpack.c.0.s8 %v337
        %v339 = vperm.slane %v325, %v338
        %v342 = vunpack.c.l.s4 1983009808
        %v343 = vunpack.c.0.s8 %v342
        %v344 = vperm.slane %v331, %v343
        %v345 = vrot.slane %v344, 4
        %vm346 = vcmask 1047556
        %v347 = vsel %vm346, %v345, %v339
        %v348 = vrot.slane %v339, 4
        %v349 = vsel %vm346, %v344, %v348
        %v351 = vunpack.c.l.s4 1934713408
        %v352 = vunpack.c.0.s8 %v351
        %v353 = vperm.slane %v347, %v352
        %v355 = vunpack.c.l.s4 1934713408
        %v356 = vunpack.c.0.s8 %v355
        %v357 = vperm.slane %v349, %v356
        %v358 = vrot.slane %v353, 4
        %v359 = vsel %vm346, 0, %v358
        %v360 = vrot.slane %v357, 4
        %v361 = vsel %vm346, 0, %v360
        %v364 = vunpack.c.l.s4 1983009808
        %v365 = vunpack.c.0.s8 %v364
        %v366 = vperm.slane %v328, %v365
        %v369 = vunpack.c.l.s4 1983009808
        %v370 = vunpack.c.0.s8 %v369
        %v371 = vperm.slane %v334, %v370
        %v372 = vrot.slane %v371, 4
        %v373 = vsel %vm346, %v372, %v366
        %v374 = vrot.slane %v366, 4
        %v375 = vsel %vm346, %v371, %v374
        %v377 = vunpack.c.l.s4 1934713408
        %v378 = vunpack.c.0.s8 %v377
        %v379 = vperm.slane %v373, %v378
        %v381 = vunpack.c.l.s4 1934713408
        %v382 = vunpack.c.0.s8 %v381
        %v383 = vperm.slane %v375, %v382
        %v384 = vrot.slane %v379, 4
        %v385 = vsel %vm346, 0, %v384
        %v386 = vrot.slane %v383, 4
        %v387 = vsel %vm346, 0, %v386
        %v388 = vsel %vm346, %v360, %v353
        %v390 = vunpack.c.l.s4 1983009808
        %v391 = vunpack.c.0.s8 %v390
        %v392 = vperm.slane %v388, %v391
        %v393 = vrot.slane %v361, 4
        %v394 = vsel %vm346, %v393, %v359
        %v396 = vunpack.c.l.s4 1983009808
        %v397 = vunpack.c.0.s8 %v396
        %v398 = vperm.slane %v394, %v397
        %v399 = vrot.slane %v398, 4
        %v400 = vsel %vm346, %v399, %v392
        %v402 = vunpack.c.l.s4 1934713408
        %v403 = vunpack.c.0.s8 %v402
        %v404 = vperm.slane %v400, %v403
        %v405 = vrot.slane %v404, 4
        %v406 = vsel %vm346, 0, %v405
        %v407 = vsel %vm346, %v386, %v379
        %v409 = vunpack.c.l.s4 1983009808
        %v410 = vunpack.c.0.s8 %v409
        %v411 = vperm.slane %v407, %v410
        %v412 = vrot.slane %v387, 4
        %v413 = vsel %vm346, %v412, %v385
        %v415 = vunpack.c.l.s4 1983009808
        %v416 = vunpack.c.0.s8 %v415
        %v417 = vperm.slane %v413, %v416
        %v418 = vrot.slane %v417, 4
        %v419 = vsel %vm346, %v418, %v411
        %v421 = vunpack.c.l.s4 1934713408
        %v422 = vunpack.c.0.s8 %v421
        %v423 = vperm.slane %v419, %v422
        %v424 = vrot.slane %v423, 4
        %v425 = vsel %vm346, 0, %v424
        %v428 = vpack.i.b16 %v423, %v404
        %v429 = vshrl.u32 %v404, 16
        %v430 = vshrl.u32 %v423, 16
        %v431 = vpack.i.b16 %v430, %v429
        %v434 = vpack.i.b16 %v425, %v406
        %v435 = vshrl.u32 %v406, 16
        %v436 = vshrl.u32 %v425, 16
        %v437 = vpack.i.b16 %v436, %v435
        %438 = vrot.lane.b32.xlu0 %v315, 96
        %v439 = vpop.permute.xlu0 %438
        %440 = vrot.lane.b32.xlu0 %v318, 96
        %v441 = vpop.permute.xlu0 %440
        %442 = vrot.lane.b32.xlu0 %v320, 96
        %v443 = vpop.permute.xlu0 %442
        %444 = vrot.lane.b32.xlu0 %v322, 96
        %v445 = vpop.permute.xlu0 %444
        %v448 = vpack.i.b16 %v441, %v439
        %v449 = vshrl.u32 %v439, 16
        %v450 = vshrl.u32 %v441, 16
        %v451 = vpack.i.b16 %v450, %v449
        %v454 = vpack.i.b16 %v445, %v443
        %v455 = vshrl.u32 %v443, 16
        %v456 = vshrl.u32 %v445, 16
        %v457 = vpack.i.b16 %v456, %v455
        %v460 = vunpack.c.l.s4 1983009808
        %v461 = vunpack.c.0.s8 %v460
        %v462 = vperm.slane %v448, %v461
        %v465 = vunpack.c.l.s4 1983009808
        %v466 = vunpack.c.0.s8 %v465
        %v467 = vperm.slane %v454, %v466
        %v468 = vrot.slane %v467, 4
        %v469 = vsel %vm346, %v468, %v462
        %v470 = vrot.slane %v462, 4
        %v471 = vsel %vm346, %v467, %v470
        %v473 = vunpack.c.l.s4 1934713408
        %v474 = vunpack.c.0.s8 %v473
        %v475 = vperm.slane %v469, %v474
        %v477 = vunpack.c.l.s4 1934713408
        %v478 = vunpack.c.0.s8 %v477
        %v479 = vperm.slane %v471, %v478
        %v480 = vrot.slane %v475, 4
        %v481 = vsel %vm346, 0, %v480
        %v482 = vrot.slane %v479, 4
        %v483 = vsel %vm346, 0, %v482
        %v486 = vunpack.c.l.s4 1983009808
        %v487 = vunpack.c.0.s8 %v486
        %v488 = vperm.slane %v451, %v487
        %v491 = vunpack.c.l.s4 1983009808
        %v492 = vunpack.c.0.s8 %v491
        %v493 = vperm.slane %v457, %v492
        %v494 = vrot.slane %v493, 4
        %v495 = vsel %vm346, %v494, %v488
        %v496 = vrot.slane %v488, 4
        %v497 = vsel %vm346, %v493, %v496
        %v499 = vunpack.c.l.s4 1934713408
        %v500 = vunpack.c.0.s8 %v499
        %v501 = vperm.slane %v495, %v500
        %v503 = vunpack.c.l.s4 1934713408
        %v504 = vunpack.c.0.s8 %v503
        %v505 = vperm.slane %v497, %v504
        %v506 = vrot.slane %v501, 4
        %v507 = vsel %vm346, 0, %v506
        %v508 = vrot.slane %v505, 4
        %v509 = vsel %vm346, 0, %v508
        %v510 = vsel %vm346, %v482, %v475
        %v512 = vunpack.c.l.s4 1983009808
        %v513 = vunpack.c.0.s8 %v512
        %v514 = vperm.slane %v510, %v513
        %v515 = vrot.slane %v483, 4
        %v516 = vsel %vm346, %v515, %v481
        %v518 = vunpack.c.l.s4 1983009808
        %v519 = vunpack.c.0.s8 %v518
        %v520 = vperm.slane %v516, %v519
        %v521 = vrot.slane %v520, 4
        %v522 = vsel %vm346, %v521, %v514
        %v524 = vunpack.c.l.s4 1934713408
        %v525 = vunpack.c.0.s8 %v524
        %v526 = vperm.slane %v522, %v525
        %v527 = vrot.slane %v526, 4
        %v528 = vsel %vm346, 0, %v527
        %v529 = vsel %vm346, %v508, %v501
        %v531 = vunpack.c.l.s4 1983009808
        %v532 = vunpack.c.0.s8 %v531
        %v533 = vperm.slane %v529, %v532
        %v534 = vrot.slane %v509, 4
        %v535 = vsel %vm346, %v534, %v507
        %v537 = vunpack.c.l.s4 1983009808
        %v538 = vunpack.c.0.s8 %v537
        %v539 = vperm.slane %v535, %v538
        %v540 = vrot.slane %v539, 4
        %v541 = vsel %vm346, %v540, %v533
        %v543 = vunpack.c.l.s4 1934713408
        %v544 = vunpack.c.0.s8 %v543
        %v545 = vperm.slane %v541, %v544
        %v546 = vrot.slane %v545, 4
        %v547 = vsel %vm346, 0, %v546
        %v550 = vpack.i.b16 %v545, %v526
        %v551 = vshrl.u32 %v526, 16
        %v552 = vshrl.u32 %v545, 16
        %v553 = vpack.i.b16 %v552, %v551
        %v556 = vpack.i.b16 %v547, %v528
        %v557 = vshrl.u32 %v528, 16
        %v558 = vshrl.u32 %v547, 16
        %v559 = vpack.i.b16 %v558, %v557
        %560 = vrot.lane.b32.xlu0 %v315, 64
        %v561 = vpop.permute.xlu0 %560
        %562 = vrot.lane.b32.xlu0 %v318, 64
        %v563 = vpop.permute.xlu0 %562
        %564 = vrot.lane.b32.xlu0 %v320, 64
        %v565 = vpop.permute.xlu0 %564
        %566 = vrot.lane.b32.xlu0 %v322, 64
        %v567 = vpop.permute.xlu0 %566
        %v570 = vpack.i.b16 %v563, %v561
        %v571 = vshrl.u32 %v561, 16
        %v572 = vshrl.u32 %v563, 16
        %v573 = vpack.i.b16 %v572, %v571
        %v576 = vpack.i.b16 %v567, %v565
        %v577 = vshrl.u32 %v565, 16
        %v578 = vshrl.u32 %v567, 16
        %v579 = vpack.i.b16 %v578, %v577
        %v582 = vunpack.c.l.s4 1983009808
        %v583 = vunpack.c.0.s8 %v582
        %v584 = vperm.slane %v570, %v583
        %v587 = vunpack.c.l.s4 1983009808
        %v588 = vunpack.c.0.s8 %v587
        %v589 = vperm.slane %v576, %v588
        %v590 = vrot.slane %v589, 4
        %v591 = vsel %vm346, %v590, %v584
        %v592 = vrot.slane %v584, 4
        %v593 = vsel %vm346, %v589, %v592
        %v595 = vunpack.c.l.s4 1934713408
        %v596 = vunpack.c.0.s8 %v595
        %v597 = vperm.slane %v591, %v596
        %v599 = vunpack.c.l.s4 1934713408
        %v600 = vunpack.c.0.s8 %v599
        %v601 = vperm.slane %v593, %v600
        %v602 = vrot.slane %v597, 4
        %v603 = vsel %vm346, 0, %v602
        %v604 = vrot.slane %v601, 4
        %v605 = vsel %vm346, 0, %v604
        %v608 = vunpack.c.l.s4 1983009808
        %v609 = vunpack.c.0.s8 %v608
        %v610 = vperm.slane %v573, %v609
        %v613 = vunpack.c.l.s4 1983009808
        %v614 = vunpack.c.0.s8 %v613
        %v615 = vperm.slane %v579, %v614
        %v616 = vrot.slane %v615, 4
        %v617 = vsel %vm346, %v616, %v610
        %v618 = vrot.slane %v610, 4
        %v619 = vsel %vm346, %v615, %v618
        %v621 = vunpack.c.l.s4 1934713408
        %v622 = vunpack.c.0.s8 %v621
        %v623 = vperm.slane %v617, %v622
        %v625 = vunpack.c.l.s4 1934713408
        %v626 = vunpack.c.0.s8 %v625
        %v627 = vperm.slane %v619, %v626
        %v628 = vrot.slane %v623, 4
        %v629 = vsel %vm346, 0, %v628
        %v630 = vrot.slane %v627, 4
        %v631 = vsel %vm346, 0, %v630
        %v632 = vsel %vm346, %v604, %v597
        %v634 = vunpack.c.l.s4 1983009808
        %v635 = vunpack.c.0.s8 %v634
        %v636 = vperm.slane %v632, %v635
        %v637 = vrot.slane %v605, 4
        %v638 = vsel %vm346, %v637, %v603
        %v640 = vunpack.c.l.s4 1983009808
        %v641 = vunpack.c.0.s8 %v640
        %v642 = vperm.slane %v638, %v641
        %v643 = vrot.slane %v642, 4
        %v644 = vsel %vm346, %v643, %v636
        %v646 = vunpack.c.l.s4 1934713408
        %v647 = vunpack.c.0.s8 %v646
        %v648 = vperm.slane %v644, %v647
        %v649 = vrot.slane %v648, 4
        %v650 = vsel %vm346, 0, %v649
        %v651 = vsel %vm346, %v630, %v623
        %v653 = vunpack.c.l.s4 1983009808
        %v654 = vunpack.c.0.s8 %v653
        %v655 = vperm.slane %v651, %v654
        %v656 = vrot.slane %v631, 4
        %v657 = vsel %vm346, %v656, %v629
        %v659 = vunpack.c.l.s4 1983009808
        %v660 = vunpack.c.0.s8 %v659
        %v661 = vperm.slane %v657, %v660
        %v662 = vrot.slane %v661, 4
        %v663 = vsel %vm346, %v662, %v655
        %v665 = vunpack.c.l.s4 1934713408
        %v666 = vunpack.c.0.s8 %v665
        %v667 = vperm.slane %v663, %v666
        %v668 = vrot.slane %v667, 4
        %v669 = vsel %vm346, 0, %v668
        %v672 = vpack.i.b16 %v667, %v648
        %v673 = vshrl.u32 %v648, 16
        %v674 = vshrl.u32 %v667, 16
        %v675 = vpack.i.b16 %v674, %v673
        %v678 = vpack.i.b16 %v669, %v650
        %v679 = vshrl.u32 %v650, 16
        %v680 = vshrl.u32 %v669, 16
        %v681 = vpack.i.b16 %v680, %v679
        %vm682 = vcmask 64512
        %v684 = vsel %vm682, %v428, 0
        %v687 = vsel %vm682, %v550, 0
        %689 = vmatpush.bf16.xpose.msra.mxu0 0
        %690 = vmatpush.bf16.xpose.msra.mxu0 0
        %691 = vmatpush.bf16.xpose.msra.mxu0 0
        %692 = vmatpush.bf16.xpose.msra.mxu0 0
        %693 = vmatpush.bf16.xpose.msra.mxu0 0
        %694 = vmatpush.bf16.xpose.msra.mxu0 0
        %695 = vmatpush.bf16.xpose.msra.mxu0 0
        %696 = vmatpush.bf16.xpose.msra.mxu0 %v687
        %697 = vmatmul.bf16.gmra.mxu0 %v684
        %v698 = vpop.f32.mrf.mxu0
        %v699 = vadd.f32 0.0, %v698
        %v700 = vpop.f32.mrf.mxu0
        %701 = vdwg.mxu0
        %v703 = vsel %vm682, %v431, 0
        %v706 = vsel %vm682, %v553, 0
        %708 = vmatpush.bf16.xpose.msra.mxu0 0
        %709 = vmatpush.bf16.xpose.msra.mxu0 0
        %710 = vmatpush.bf16.xpose.msra.mxu0 0
        %711 = vmatpush.bf16.xpose.msra.mxu0 0
        %712 = vmatpush.bf16.xpose.msra.mxu0 0
        %713 = vmatpush.bf16.xpose.msra.mxu0 0
        %714 = vmatpush.bf16.xpose.msra.mxu0 0
        %715 = vmatpush.bf16.xpose.msra.mxu0 %v706
        %716 = vmatmul.bf16.gmra.mxu0 %v703
        %v717 = vpop.f32.mrf.mxu0
        %v718 = vadd.f32 0.0, %v717
        %v719 = vpop.f32.mrf.mxu0
        %720 = vdwg.mxu0
        %v722 = vsel %vm682, %v434, 0
        %v725 = vsel %vm682, %v556, 0
        %727 = vmatpush.bf16.xpose.msra.mxu0 0
        %728 = vmatpush.bf16.xpose.msra.mxu0 0
        %729 = vmatpush.bf16.xpose.msra.mxu0 0
        %730 = vmatpush.bf16.xpose.msra.mxu0 0
        %731 = vmatpush.bf16.xpose.msra.mxu0 0
        %732 = vmatpush.bf16.xpose.msra.mxu0 0
        %733 = vmatpush.bf16.xpose.msra.mxu0 0
        %734 = vmatpush.bf16.xpose.msra.mxu0 %v725
        %735 = vmatmul.bf16.gmra.mxu0 %v722
        %v736 = vpop.f32.mrf.mxu0
        %v737 = vadd.f32 0.0, %v736
        %v738 = vpop.f32.mrf.mxu0
        %739 = vdwg.mxu0
        %v741 = vsel %vm682, %v437, 0
        %v744 = vsel %vm682, %v559, 0
        %746 = vmatpush.bf16.xpose.msra.mxu0 0
        %747 = vmatpush.bf16.xpose.msra.mxu0 0
        %748 = vmatpush.bf16.xpose.msra.mxu0 0
        %749 = vmatpush.bf16.xpose.msra.mxu0 0
        %750 = vmatpush.bf16.xpose.msra.mxu0 0
        %751 = vmatpush.bf16.xpose.msra.mxu0 0
        %752 = vmatpush.bf16.xpose.msra.mxu0 0
        %753 = vmatpush.bf16.xpose.msra.mxu0 %v744
        %754 = vmatmul.bf16.gmra.mxu0 %v741
        %v755 = vpop.f32.mrf.mxu0
        %v756 = vadd.f32 0.0, %v755
        %v757 = vpop.f32.mrf.mxu0
        %758 = vdwg.mxu0
        %v759 = vlaneseq
        %v760 = vshrl.u32 %v759, 7
        %v761 = vlaneseq
        %v762 = vand.u32 %v761, 127
        %vm763 = vcmp.le.s32.totalorder %v762, %v760
        %v764 = vsel %vm763, 1, 0
        %vm765 = vcmp.eq.s32.totalorder %v764, 1
        %v766 = vsel %vm765, %v699, -1e+30
        %v767 = vsel %vm765, %v718, -1e+30
        %v768 = vsel %vm765, %v737, -1e+30
        %v769 = vsel %vm765, %v756, -1e+30
        %v770 = vsel %vm682, %v766, -inf
        %771 = vmax.xlane.f32.xlu0 %v770
        %v772 = vpop.xlane.xlu0 %771
        %v773 = vsel %vm682, %v767, -inf
        %774 = vmax.xlane.f32.xlu0 %v773
        %v775 = vpop.xlane.xlu0 %774
        %v776 = vsel %vm682, %v768, -inf
        %777 = vmax.xlane.f32.xlu0 %v776
        %v778 = vpop.xlane.xlu0 %777
        %v779 = vsel %vm682, %v769, -inf
        %780 = vmax.xlane.f32.xlu0 %v779
        %v781 = vpop.xlane.xlu0 %780
        %v782 = vsub.f32 %v766, %v772
        %v783 = vsub.f32 %v767, %v775
        %v784 = vsub.f32 %v768, %v778
        %v785 = vsub.f32 %v769, %v781
        %v786 = vmul.f32 %v782, 1.442695
        %v787 = vpow.pop %v786
        %v788 = vmul.f32 %v783, 1.442695
        %v789 = vpow.pop %v788
        %v790 = vmul.f32 %v784, 1.442695
        %v791 = vpow.pop %v790
        %v792 = vmul.f32 %v785, 1.442695
        %v793 = vpow.pop %v792
        %v794 = vsel %vm682, %v787, 0.0
        %795 = vadd.xlane.f32.xlu0 %v794
        %v796 = vpop.xlane.xlu0 %795
        %v797 = vsel %vm682, %v789, 0.0
        %798 = vadd.xlane.f32.xlu0 %v797
        %v799 = vpop.xlane.xlu0 %798
        %v800 = vsel %vm682, %v791, 0.0
        %801 = vadd.xlane.f32.xlu0 %v800
        %v802 = vpop.xlane.xlu0 %801
        %v803 = vsel %vm682, %v793, 0.0
        %804 = vadd.xlane.f32.xlu0 %v803
        %v805 = vpop.xlane.xlu0 %804
        %v806 = vrcp.pop %v796
        %v807 = vrcp.pop %v799
        %v808 = vrcp.pop %v802
        %v809 = vrcp.pop %v805
        %v810 = vmul.f32 %v787, %v806
        %v811 = vmul.f32 %v789, %v807
        %v812 = vmul.f32 %v791, %v808
        %v813 = vmul.f32 %v793, %v809
        %v814 = vpack.c.bf16 %v810, %v810
        %v815 = vpack.c.bf16 %v811, %v811
        %v816 = vpack.c.bf16 %v812, %v812
        %v817 = vpack.c.bf16 %v813, %v813
        %v819 = vsel %vm682, %v814, 0
        %vm821 = vcmask 1043456
        %v823 = vsel %vm821, %v672, 0
        %825 = vmatpush.bf16.msra.mxu0 0
        %826 = vmatpush.bf16.msra.mxu0 0
        %827 = vmatpush.bf16.msra.mxu0 0
        %828 = vmatpush.bf16.msra.mxu0 0
        %829 = vmatpush.bf16.msra.mxu0 0
        %830 = vmatpush.bf16.msra.mxu0 0
        %831 = vmatpush.bf16.msra.mxu0 0
        %832 = vmatpush.bf16.msra.mxu0 %v823
        %833 = vmatmul.bf16.gmra.mxu0 %v819
        %v834 = vpop.f32.mrf.mxu0
        %v835 = vadd.f32 0.0, %v834
        %v836 = vpop.f32.mrf.mxu0
        %837 = vdwg.mxu0
        %v839 = vsel %vm682, %v815, 0
        %v842 = vsel %vm821, %v675, 0
        %844 = vmatpush.bf16.msra.mxu0 0
        %845 = vmatpush.bf16.msra.mxu0 0
        %846 = vmatpush.bf16.msra.mxu0 0
        %847 = vmatpush.bf16.msra.mxu0 0
        %848 = vmatpush.bf16.msra.mxu0 0
        %849 = vmatpush.bf16.msra.mxu0 0
        %850 = vmatpush.bf16.msra.mxu0 0
        %851 = vmatpush.bf16.msra.mxu0 %v842
        %852 = vmatmul.bf16.gmra.mxu0 %v839
        %v853 = vpop.f32.mrf.mxu0
        %v854 = vadd.f32 0.0, %v853
        %v855 = vpop.f32.mrf.mxu0
        %856 = vdwg.mxu0
        %v858 = vsel %vm682, %v816, 0
        %v861 = vsel %vm821, %v678, 0
        %863 = vmatpush.bf16.msra.mxu0 0
        %864 = vmatpush.bf16.msra.mxu0 0
        %865 = vmatpush.bf16.msra.mxu0 0
        %866 = vmatpush.bf16.msra.mxu0 0
        %867 = vmatpush.bf16.msra.mxu0 0
        %868 = vmatpush.bf16.msra.mxu0 0
        %869 = vmatpush.bf16.msra.mxu0 0
        %870 = vmatpush.bf16.msra.mxu0 %v861
        %871 = vmatmul.bf16.gmra.mxu0 %v858
        %v872 = vpop.f32.mrf.mxu0
        %v873 = vadd.f32 0.0, %v872
        %v874 = vpop.f32.mrf.mxu0
        %875 = vdwg.mxu0
        %v877 = vsel %vm682, %v817, 0
        %v880 = vsel %vm821, %v681, 0
        %882 = vmatpush.bf16.msra.mxu0 0
        %883 = vmatpush.bf16.msra.mxu0 0
        %884 = vmatpush.bf16.msra.mxu0 0
        %885 = vmatpush.bf16.msra.mxu0 0
        %886 = vmatpush.bf16.msra.mxu0 0
        %887 = vmatpush.bf16.msra.mxu0 0
        %888 = vmatpush.bf16.msra.mxu0 0
        %889 = vmatpush.bf16.msra.mxu0 %v880
        %890 = vmatmul.bf16.gmra.mxu0 %v877
        %v891 = vpop.f32.mrf.mxu0
        %v892 = vadd.f32 0.0, %v891
        %v893 = vpop.f32.mrf.mxu0
        %894 = vdwg.mxu0
        %v895 = vpack.c.bf16 %v835, %v835
        %v896 = vpack.c.bf16 %v854, %v854
        %v897 = vpack.c.bf16 %v873, %v873
        %v898 = vpack.c.bf16 %v892, %v892
        %v901 = vpack.i.b16 %v896, %v895
        %v902 = vshrl.u32 %v895, 16
        %v903 = vshrl.u32 %v896, 16
        %v904 = vpack.i.b16 %v903, %v902
        %v907 = vpack.i.b16 %v898, %v897
        %v908 = vshrl.u32 %v897, 16
        %v909 = vshrl.u32 %v898, 16
        %v910 = vpack.i.b16 %v909, %v908
        %v913 = vunpack.c.l.s4 1983009808
        %v914 = vunpack.c.0.s8 %v913
        %v915 = vperm.slane %v901, %v914
        %v918 = vunpack.c.l.s4 1983009808
        %v919 = vunpack.c.0.s8 %v918
        %v920 = vperm.slane %v907, %v919
        %v921 = vrot.slane %v920, 4
        %v922 = vsel %vm346, %v921, %v915
        %v923 = vrot.slane %v915, 4
        %v924 = vsel %vm346, %v920, %v923
        %v926 = vunpack.c.l.s4 1934713408
        %v927 = vunpack.c.0.s8 %v926
        %v928 = vperm.slane %v922, %v927
        %v930 = vunpack.c.l.s4 1934713408
        %v931 = vunpack.c.0.s8 %v930
        %v932 = vperm.slane %v924, %v931
        %v933 = vrot.slane %v928, 4
        %v934 = vsel %vm346, 0, %v933
        %v935 = vrot.slane %v932, 4
        %v936 = vsel %vm346, 0, %v935
        %v939 = vunpack.c.l.s4 1983009808
        %v940 = vunpack.c.0.s8 %v939
        %v941 = vperm.slane %v904, %v940
        %v944 = vunpack.c.l.s4 1983009808
        %v945 = vunpack.c.0.s8 %v944
        %v946 = vperm.slane %v910, %v945
        %v947 = vrot.slane %v946, 4
        %v948 = vsel %vm346, %v947, %v941
        %v949 = vrot.slane %v941, 4
        %v950 = vsel %vm346, %v946, %v949
        %v952 = vunpack.c.l.s4 1934713408
        %v953 = vunpack.c.0.s8 %v952
        %v954 = vperm.slane %v948, %v953
        %v956 = vunpack.c.l.s4 1934713408
        %v957 = vunpack.c.0.s8 %v956
        %v958 = vperm.slane %v950, %v957
        %v959 = vrot.slane %v954, 4
        %v960 = vsel %vm346, 0, %v959
        %v961 = vrot.slane %v958, 4
        %v962 = vsel %vm346, 0, %v961
        %v963 = vsel %vm346, %v935, %v928
        %v965 = vunpack.c.l.s4 1983009808
        %v966 = vunpack.c.0.s8 %v965
        %v967 = vperm.slane %v963, %v966
        %v968 = vrot.slane %v936, 4
        %v969 = vsel %vm346, %v968, %v934
        %v971 = vunpack.c.l.s4 1983009808
        %v972 = vunpack.c.0.s8 %v971
        %v973 = vperm.slane %v969, %v972
        %v974 = vrot.slane %v973, 4
        %v975 = vsel %vm346, %v974, %v967
        %v977 = vunpack.c.l.s4 1934713408
        %v978 = vunpack.c.0.s8 %v977
        %v979 = vperm.slane %v975, %v978
        %v980 = vrot.slane %v979, 4
        %v981 = vsel %vm346, 0, %v980
        %v982 = vsel %vm346, %v961, %v954
        %v984 = vunpack.c.l.s4 1983009808
        %v985 = vunpack.c.0.s8 %v984
        %v986 = vperm.slane %v982, %v985
        %v987 = vrot.slane %v962, 4
        %v988 = vsel %vm346, %v987, %v960
        %v990 = vunpack.c.l.s4 1983009808
        %v991 = vunpack.c.0.s8 %v990
        %v992 = vperm.slane %v988, %v991
        %v993 = vrot.slane %v992, 4
        %v994 = vsel %vm346, %v993, %v986
        %v996 = vunpack.c.l.s4 1934713408
        %v997 = vunpack.c.0.s8 %v996
        %v998 = vperm.slane %v994, %v997
        %v999 = vrot.slane %v998, 4
        %v1000 = vsel %vm346, 0, %v999
        %v1003 = vpack.i.b16 %v998, %v979
        %v1004 = vshrl.u32 %v979, 16
        %v1005 = vshrl.u32 %v998, 16
        %v1006 = vpack.i.b16 %v1005, %v1004
        %v1009 = vpack.i.b16 %v1000, %v981
        %v1010 = vshrl.u32 %v981, 16
        %v1011 = vshrl.u32 %v1000, 16
        %v1012 = vpack.i.b16 %v1011, %v1010
        %v1013 = vunpack.c.l.b16 %v1006
        %v1014 = vpack.c.b16 %v1013, %v1013
        %1015 = vrot.lane.b32.xlu0 %v1014, 8
        %v1016 = vpop.permute.xlu0 %1015
        %v1017 = vunpack.c.l.b16 %v1009
        %v1018 = vpack.c.b16 %v1017, %v1017
        %1019 = vrot.lane.b32.xlu0 %v1018, 16
        %v1020 = vpop.permute.xlu0 %1019
        %v1021 = vunpack.c.l.b16 %v1012
        %v1022 = vpack.c.b16 %v1021, %v1021
        %1023 = vrot.lane.b32.xlu0 %v1022, 24
        %v1024 = vpop.permute.xlu0 %1023
        %v1027 = vsel %vm682, %v1003, %v1016
        %vm1028 = vcmask 130048
        %v1030 = vsel %vm1028, %v1027, %v1020
        %vm1031 = vcmask 195584
        %v1033 = vsel %vm1031, %v1030, %v1024
        %v1034 = vld [vmem:[#allocation7] sm:$0xf]
        %v1035 = vld [vmem:[#allocation7 + $0x4] sm:$0xf]
        %v1036 = vld [vmem:[#allocation7 + $0x8] sm:$0xf]
        %v1037 = vld [vmem:[#allocation7 + $0xc] sm:$0xf]
        %v1038 = vld [vmem:[%s4] sm:$0x1]
        %v1040 = vperm.slane %v1038, 0
        %v1046 = vunpack.c.l.b16 %v1034
        %v1047 = vunpack.c.l.b16 %v1035
        %v1048 = vunpack.c.l.b16 %v1036
        %v1049 = vunpack.c.l.b16 %v1037
        %v1050 = vpack.c.b16 %v1047, %v1046
        %v1051 = vpack.c.b16 %v1049, %v1048
        %v1054 = vsel %vm298, %v1033, 0
        %1056 = vmatpush.bf16.msra.mxu0 0
        %1057 = vmatpush.bf16.msra.mxu0 0
        %1058 = vmatpush.bf16.msra.mxu0 0
        %1059 = vmatpush.bf16.msra.mxu0 0
        %1060 = vmatpush.bf16.msra.mxu0 0
        %1061 = vmatpush.bf16.msra.mxu0 0
        %1062 = vmatpush.bf16.msra.mxu0 %v1051
        %1063 = vmatpush.bf16.msra.mxu0 %v1050
        %1064 = vmatmul.bf16.gmra.mxu0 %v1054
        %v1065 = vpop.f32.mrf.mxu0
        %v1066 = vadd.f32 %v1040, %v1065
        %v1067 = vpop.f32.mrf.mxu0
        %1068 = vdwg.mxu0
        %1069 = vst.msk [vmem:[%s274] sm:$0xff] %vm298, %v1066
        %s1070 = sand.u32 %s141, 1
        %s1071 = scalar_lea.sflag [#allocation4], %s1070
        %s1072 = sand.u32 %s141, 1
        %s1073 = smul.addr %s1072, 8
        %s1074 = scalar_lea.vmem [#allocation8], %s1073
        // Predicated region
        $region53: #{tpu_custom_call.1} parent=39 // pred_check
          %p1075 = pneg %p151
        $region54: #{tpu_custom_call.1} parent=39 // pred_check_branch
          %1077 = sbr.rel (%p1075) target = $region56
        $region55: #{tpu_custom_call.1} parent=39 // pred_region
          %1079 = vsyncadd %s1071, 0
          %s1080 = smul.addr %s23, 8
          %s1081 = scalar_lea.hbm %s5, %s1080
          %s1083 = sshll.u32 %s1074, 4
          %s1084 = int_to_ptr.vmem [resolvable:$true] %s1083
          %s1085 = sshll.u32 %s1081, 4
          %s1086 = int_to_ptr.hbm [resolvable:$true] %s1085
          %1088 = dma.vmem_to_hbm [thread:$0]  %s1084, 128, %s1086, %s1071
        $region56: #{tpu_custom_call.1} parent=39 // pred_fallthru
          _
      $region40: #{tpu_custom_call.1} parent=5 // pred_fallthru
        _
      %p1089 = scmp.le.s32.totalorder 2, %s18
      // Predicated region
      $region57: #{tpu_custom_call.1} parent=5 // pred_check
        %p1090 = pneg %p1089
      $region58: #{tpu_custom_call.1} parent=5 // pred_check_branch
        %1092 = sbr.rel (%p1090) target = $region60
      $region59: #{tpu_custom_call.1} parent=5 // pred_region
        %s1093 = ssub.s32 %s18, 2
        // Predicated region
        $region61: #{tpu_custom_call.1} parent=59 // pred_check
          %p1094 = pneg %p157
        $region62: #{tpu_custom_call.1} parent=59 // pred_check_branch
          %1096 = sbr.rel (%p1094) target = $region64
        $region63: #{tpu_custom_call.1} parent=59 // pred_region
          %s1097 = sand.u32 %s142, 1
          %s1098 = scalar_lea.sflag [#allocation4], %s1097
          %s1099 = sand.u32 %s142, 1
          %s1100 = smul.addr %s1099, 8
          %s1101 = scalar_lea.vmem [#allocation8], %s1100
          %1103 = dma.done %s1098, 128
        $region64: #{tpu_custom_call.1} parent=59 // pred_fallthru
          _
      $region60: #{tpu_custom_call.1} parent=5 // pred_fallthru
        _
    $region6: #{tpu_custom_call.1} parent=1 // loop_footer
      %s22 = sadd.s32 1, %s18
    $region7: #{tpu_custom_call.1} parent=1 // loop_footer_branch
      %17 = sbr.rel target = $region3
    $region8: #{tpu_custom_call.1} parent=1 // loop_exit
      _
    %1104 = vsyncpa [#allocation3], 1
    %s1105 = scalar_lea.sflag [#allocation3], 1
    %1106 = vsyncpa %s1105, 1
    %1107 = vsyncpa [#allocation6], 1
    %1108 = vsyncpa [#allocation4], 1
    %s1109 = scalar_lea.sflag [#allocation4], 1
    %1110 = vsyncpa %s1109, 1

</llo_original>
